<compile_context>
chip_gen: v5e
topology: v5e:2x2
jax: 0.10.0
libtpu: 0.0.40
codegen_flags: <defaults>
</compile_context>

<pallas_src>
import functools

import numpy as np
import jax
import jax.numpy as jnp
from jax import lax
from jax.experimental import pallas as pl
from jax.experimental.pallas import tpu as pltpu

# ----------------------------- configuration --------------------------------
TP = 16
HIDDEN = 128                            # config.hidden_size
NUM_HEADS_GLOBAL = 16                   # config.num_attention_heads
NUM_HEADS = NUM_HEADS_GLOBAL // TP      # local heads on this TP shard -> 1
HEAD_DIM = HIDDEN // TP // NUM_HEADS    # 8
SPLIT = HIDDEN // TP                    # 8  (local q/k/v width)
INNER = 4 * HIDDEN                      # config.n_inner = 4*H
INNER_LOCAL = INNER // TP               # 32
LN_EPS = 1e-5
MASK_VALUE = -10000.0                   # GPT2Attention.masked_bias
INV_SQRT2 = 0.7071067811865476
SCALE = 1.0 / (float(HEAD_DIM) ** 0.5)

BATCH = 2
SEQ = 8

# TODO(synk): generic NUM_HEADS > 1 path (heads-stacked einsum layout) not implemented;
# for TP=16 the local shard always has exactly one head.
assert NUM_HEADS == 1


def _layernorm_noaffine(x):
    # Independent reductions (overlap on the XLU); affine is folded into the
    # following Conv1D weights at pack time.
    mu = jnp.mean(x, axis=-1, keepdims=True)
    ms = jnp.mean(x * x, axis=-1, keepdims=True)
    var = ms - mu * mu
    return (x - mu) * lax.rsqrt(var + LN_EPS)


# ------------------------------- kernel --------------------------------------
def gpt2_block_kernel(x_ref, vec_ref, w_ref, out_ref, *, n_rows):
    x = x_ref[...]                                   # (B*S, 128) lane-dense slab

    # ---- ln_1 (gamma/beta folded into w_qkv / b_qkv) ----
    xn1 = _layernorm_noaffine(x)

    # ---- attn.c_attn (Conv1D), lane-padded to 128 output lanes ----
    w_qkv = w_ref[0 * HIDDEN:1 * HIDDEN, :]          # (128, 128), cols 0:24 live
    qkv = jnp.dot(xn1, w_qkv, preferred_element_type=jnp.float32) + vec_ref[0:1, :]
    # qkv columns: [0:8)=q, [8:16)=k, [16:24)=v, [24:128)=0

    # ---- v @ W_proj first (independent of softmax -> MXU overlaps VPU/EUP work) ----
    # w_vproj has W_proj embedded at rows 16:24, zeros elsewhere, so qkv @ w_vproj == v @ W_proj.
    w_vproj = w_ref[2 * HIDDEN:3 * HIDDEN, :]        # (128, 128)
    vproj = jnp.dot(qkv, w_vproj, preferred_element_type=jnp.float32)   # (B*S, 128)

    # ---- attention scores + fused scale & constant block-diagonal causal bias ----
    q = qkv[:, 0:HEAD_DIM]
    k = qkv[:, SPLIT:SPLIT + HEAD_DIM]
    contract_last = (((1,), (1,)), ((), ()))         # q @ k^T without explicit transpose
    s = lax.dot_general(q, k, contract_last, preferred_element_type=jnp.float32)
    s = s * SCALE + vec_ref[8:8 + n_rows, 0:n_rows]  # precomputed 0 / -10000 bias

    # ---- softmax (row-max kept so masked entries underflow to exactly 0) ----
    s = s - jnp.max(s, axis=-1, keepdims=True)
    p = jnp.exp(s)
    p = p * pl.reciprocal(jnp.sum(p, axis=-1, keepdims=True), approx=True)

    # ---- attn.c_proj (already applied to v) + bias, residual add ----
    attn_out = jnp.dot(p, vproj, preferred_element_type=jnp.float32) + vec_ref[1:2, :]
    h1 = attn_out + x

    # ---- ln_2 (affine folded) + mlp.c_fc (lane-padded) + exact GELU + mlp.c_proj ----
    xn2 = _layernorm_noaffine(h1)
    w_fc = w_ref[1 * HIDDEN:2 * HIDDEN, :]           # (128, 128), cols 0:32 live
    f = jnp.dot(xn2, w_fc, preferred_element_type=jnp.float32) + vec_ref[2:3, :]
    f = 0.5 * f * (1.0 + lax.erf(f * INV_SQRT2))     # padded lanes stay exactly 0
    w_mlp = w_ref[3 * HIDDEN:4 * HIDDEN, :]          # (128, 128), rows 0:32 live
    m = jnp.dot(f, w_mlp, preferred_element_type=jnp.float32) + vec_ref[3:4, :]

    # ---- final residual add ----
    out_ref[...] = h1 + m


# --------------------------- operand packing ----------------------------------
def pack_operands(params, batch, seq):
    """Pack the 12 parameters + constant mask bias into 2 lane-dense slabs."""
    n_rows = batch * seq
    H = HIDDEN

    # Fold LayerNorm affine into the following Conv1D weights/biases.
    w_qkv_eff = params["ln1_g"][0][:, None] * params["w_qkv"]                 # (128, 24)
    b_qkv_eff = params["b_qkv"][0] + params["ln1_b"][0] @ params["w_qkv"]     # (24,)
    w_fc_eff = params["ln2_g"][0][:, None] * params["w_fc"]                   # (128, 32)
    b_fc_eff = params["b_fc"][0] + params["ln2_b"][0] @ params["w_fc"]        # (32,)

    # Weight slab (4*H, H): every matmul in the kernel becomes K=128 x N=128.
    w_slab = jnp.zeros((4 * H, H), jnp.float32)
    w_slab = w_slab.at[0 * H:0 * H + H, 0:3 * SPLIT].set(w_qkv_eff)
    w_slab = w_slab.at[1 * H:1 * H + H, 0:INNER_LOCAL].set(w_fc_eff)
    w_slab = w_slab.at[2 * H + 2 * SPLIT:2 * H + 3 * SPLIT, :].set(params["w_attn_proj"])
    w_slab = w_slab.at[3 * H:3 * H + INNER_LOCAL, :].set(params["w_mlp_proj"])

    # Vector + mask slab (8 + n_rows, H).
    vec_slab = jnp.zeros((8 + n_rows, H), jnp.float32)
    vec_slab = vec_slab.at[0, 0:3 * SPLIT].set(b_qkv_eff)
    vec_slab = vec_slab.at[1, :].set(params["b_attn_proj"][0])
    vec_slab = vec_slab.at[2, 0:INNER_LOCAL].set(b_fc_eff)
    vec_slab = vec_slab.at[3, :].set(params["b_mlp_proj"][0])

    # Block-diagonal causal additive mask bias, built at trace time with numpy.
    row = np.arange(n_rows)[:, None]
    col = np.arange(n_rows)[None, :]
    allowed = ((row // seq) == (col // seq)) & ((col % seq) <= (row % seq))
    bias = np.where(allowed, 0.0, MASK_VALUE).astype(np.float32)
    vec_slab = vec_slab.at[8:8 + n_rows, 0:n_rows].set(jnp.asarray(bias))

    return vec_slab, w_slab


# ------------------------------- wrapper --------------------------------------
def gpt2_block_forward(x, params):
    B, S, H = x.shape
    assert H == HIDDEN
    n_rows = B * S
    x_flat = x.reshape(n_rows, H)                    # lane-dense (rows, 128) slab
    vec_slab, w_slab = pack_operands(params, B, S)

    # Single kernel invocation (no grid): only 3 HBM->VMEM copies (x, vec, weights),
    # all lane-dense; no per-grid-step overhead, no double-buffered weight copies.
    vmem = pl.BlockSpec(memory_space=pltpu.MemorySpace.VMEM)

    out_flat = pl.pallas_call(
        functools.partial(gpt2_block_kernel, n_rows=n_rows),
        out_shape=jax.ShapeDtypeStruct((n_rows, H), x.dtype),
        in_specs=[vmem, vmem, vmem],
        out_specs=vmem,
    )(x_flat, vec_slab, w_slab)

    return out_flat.reshape(B, S, H)


# ------------------------------ parameters ------------------------------------
def make_params(key):
    ks = jax.random.split(key, 4)
    p = {}
    # LayerNorms: weight=1, bias=0 (PyTorch default init)
    p["ln1_g"] = jnp.ones((1, HIDDEN), jnp.float32)
    p["ln1_b"] = jnp.zeros((1, HIDDEN), jnp.float32)
    p["ln2_g"] = jnp.ones((1, HIDDEN), jnp.float32)
    p["ln2_b"] = jnp.zeros((1, HIDDEN), jnp.float32)
    # Conv1D weights: normal(std=0.02), bias=0 (shapes are (nx, nf))
    p["w_qkv"] = 0.02 * jax.random.normal(ks[0], (HIDDEN, 3 * SPLIT), jnp.float32)
    p["b_qkv"] = jnp.zeros((1, 3 * SPLIT), jnp.float32)
    p["w_attn_proj"] = 0.02 * jax.random.normal(ks[1], (SPLIT, HIDDEN), jnp.float32)
    p["b_attn_proj"] = jnp.zeros((1, HIDDEN), jnp.float32)
    p["w_fc"] = 0.02 * jax.random.normal(ks[2], (HIDDEN, INNER_LOCAL), jnp.float32)
    p["b_fc"] = jnp.zeros((1, INNER_LOCAL), jnp.float32)
    p["w_mlp_proj"] = 0.02 * jax.random.normal(ks[3], (INNER_LOCAL, HIDDEN), jnp.float32)
    p["b_mlp_proj"] = jnp.zeros((1, HIDDEN), jnp.float32)
    return p


# ------------------------- plain-JAX reference ---------------------------------
def reference(x, p):
    def ln(t, g, b):
        mu = t.mean(-1, keepdims=True)
        var = ((t - mu) ** 2).mean(-1, keepdims=True)
        return (t - mu) / jnp.sqrt(var + LN_EPS) * g[0] + b[0]

    B, S, _ = x.shape
    h = ln(x, p["ln1_g"], p["ln1_b"])
    qkv = h @ p["w_qkv"] + p["b_qkv"][0]
    q, k, v = jnp.split(qkv, 3, axis=-1)

    def split_heads(t):
        return t.reshape(B, S, NUM_HEADS, HEAD_DIM).transpose(0, 2, 1, 3)

    q, k, v = split_heads(q), split_heads(k), split_heads(v)
    aw = jnp.einsum("bhqd,bhkd->bhqk", q, k) / (float(HEAD_DIM) ** 0.5)
    mask = jnp.tril(jnp.ones((S, S), bool))
    aw = jnp.where(mask, aw, MASK_VALUE)
    aw = jax.nn.softmax(aw, axis=-1)
    ao = jnp.einsum("bhqk,bhkd->bhqd", aw, v).transpose(0, 2, 1, 3).reshape(B, S, SPLIT)
    ao = ao @ p["w_attn_proj"] + p["b_attn_proj"][0]
    h1 = ao + x
    h2 = ln(h1, p["ln2_g"], p["ln2_b"])
    f = h2 @ p["w_fc"] + p["b_fc"][0]
    f = jax.nn.gelu(f, approximate=False)
    m = f @ p["w_mlp_proj"] + p["b_mlp_proj"][0]
    return h1 + m


# ---------------------------------- main ----------------------------------------
if __name__ == "__main__":
    key = jax.random.PRNGKey(0)
    kx, kp = jax.random.split(key)
    x = jax.random.normal(kx, (BATCH, SEQ, HIDDEN), jnp.float32)
    params = make_params(kp)

    out = gpt2_block_forward(x, params)
    out = jax.block_until_ready(out)

    ref = jax.block_until_ready(reference(x, params))
    assert out.shape == (BATCH, SEQ, HIDDEN)
    assert jnp.allclose(out, ref, atol=1e-3, rtol=1e-3), "mismatch vs reference"

    print("KERNEL_OK")
</pallas_src>

<mosaic_0001>
module attributes {stable_mosaic.version = 11 : i64} {
  func.func @gpt2_block_kernel(%arg0: memref<16x128xf32, #tpu.memory_space<vmem>>, %arg1: memref<24x128xf32, #tpu.memory_space<vmem>>, %arg2: memref<512x128xf32, #tpu.memory_space<vmem>>, %arg3: memref<16x128xf32, #tpu.memory_space<vmem>>) attributes {dimension_semantics = [], scalar_prefetch = 0 : i64, scratch_operands = 0 : i64, tpu.core_type = #tpu.core_type<tc>} {
    %c0 = arith.constant 0 : index
    %c0_0 = arith.constant 0 : index
    %0 = vector.load %arg0[%c0, %c0_0] : memref<16x128xf32, #tpu.memory_space<vmem>>, vector<16x128xf32>
    %cst = arith.constant dense<0.000000e+00> : vector<16xf32>
    %1 = vector.multi_reduction <add>, %0, %cst [1] : vector<16x128xf32> to vector<16xf32>
    %2 = vector.shape_cast %1 : vector<16xf32> to vector<16x1xf32>
    %cst_1 = arith.constant 1.280000e+02 : f32
    %3 = vector.broadcast %cst_1 : f32 to vector<16x1xf32>
    %4 = arith.divf %2, %3 : vector<16x1xf32>
    %5 = arith.mulf %0, %0 : vector<16x128xf32>
    %cst_2 = arith.constant dense<0.000000e+00> : vector<16xf32>
    %6 = vector.multi_reduction <add>, %5, %cst_2 [1] : vector<16x128xf32> to vector<16xf32>
    %7 = vector.shape_cast %6 : vector<16xf32> to vector<16x1xf32>
    %cst_3 = arith.constant 1.280000e+02 : f32
    %8 = vector.broadcast %cst_3 : f32 to vector<16x1xf32>
    %9 = arith.divf %7, %8 : vector<16x1xf32>
    %10 = arith.mulf %4, %4 : vector<16x1xf32>
    %11 = arith.subf %9, %10 : vector<16x1xf32>
    %12 = vector.broadcast %4 : vector<16x1xf32> to vector<16x128xf32>
    %13 = arith.subf %0, %12 : vector<16x128xf32>
    %cst_4 = arith.constant 9.99999974E-6 : f32
    %14 = vector.broadcast %cst_4 : f32 to vector<16x1xf32>
    %15 = arith.addf %11, %14 : vector<16x1xf32>
    %16 = math.rsqrt %15 : vector<16x1xf32>
    %17 = vector.broadcast %16 : vector<16x1xf32> to vector<16x128xf32>
    %18 = arith.mulf %13, %17 : vector<16x128xf32>
    %c0_5 = arith.constant 0 : index
    %c0_6 = arith.constant 0 : index
    %19 = vector.load %arg2[%c0_5, %c0_6] : memref<512x128xf32, #tpu.memory_space<vmem>>, vector<128x128xf32>
    %cst_7 = arith.constant dense<0.000000e+00> : vector<16x128xf32>
    %20 = tpu.matmul %18, %19, %cst_7 {dimension_numbers = #tpu.dot_dimension_numbers<[1], [0], [0], [1], [0, 0, 1, 1], [], []>} : vector<16x128xf32>, vector<128x128xf32>, vector<16x128xf32> -> vector<16x128xf32>
    %c0_8 = arith.constant 0 : index
    %c0_9 = arith.constant 0 : index
    %21 = vector.load %arg1[%c0_8, %c0_9] : memref<24x128xf32, #tpu.memory_space<vmem>>, vector<1x128xf32>
    %22 = vector.broadcast %21 : vector<1x128xf32> to vector<16x128xf32>
    %23 = arith.addf %20, %22 : vector<16x128xf32>
    %c256 = arith.constant 256 : index
    %c0_10 = arith.constant 0 : index
    %24 = vector.load %arg2[%c256, %c0_10] : memref<512x128xf32, #tpu.memory_space<vmem>>, vector<128x128xf32>
    %cst_11 = arith.constant dense<0.000000e+00> : vector<16x128xf32>
    %25 = tpu.matmul %23, %24, %cst_11 {dimension_numbers = #tpu.dot_dimension_numbers<[1], [0], [0], [1], [0, 0, 1, 1], [], []>} : vector<16x128xf32>, vector<128x128xf32>, vector<16x128xf32> -> vector<16x128xf32>
    %26 = vector.extract_strided_slice %23 {offsets = [0, 0], sizes = [16, 8], strides = [1, 1]} : vector<16x128xf32> to vector<16x8xf32>
    %27 = vector.extract_strided_slice %23 {offsets = [0, 8], sizes = [16, 8], strides = [1, 1]} : vector<16x128xf32> to vector<16x8xf32>
    %cst_12 = arith.constant dense<0.000000e+00> : vector<16x16xf32>
    %28 = tpu.matmul %26, %27, %cst_12 {dimension_numbers = #tpu.dot_dimension_numbers<[1], [1], [0], [0], [0, 0, 1, 0], [], []>} : vector<16x8xf32>, vector<16x8xf32>, vector<16x16xf32> -> vector<16x16xf32>
    %cst_13 = arith.constant 0.353553385 : f32
    %29 = vector.broadcast %cst_13 : f32 to vector<16x16xf32>
    %30 = arith.mulf %28, %29 : vector<16x16xf32>
    %c8 = arith.constant 8 : index
    %c0_14 = arith.constant 0 : index
    %31 = vector.load %arg1[%c8, %c0_14] : memref<24x128xf32, #tpu.memory_space<vmem>>, vector<16x16xf32>
    %32 = arith.addf %30, %31 : vector<16x16xf32>
    %cst_15 = arith.constant dense<0xFF800000> : vector<16xf32>
    %33 = vector.multi_reduction <maximumf>, %32, %cst_15 [1] : vector<16x16xf32> to vector<16xf32>
    %34 = vector.shape_cast %33 : vector<16xf32> to vector<16x1xf32>
    %35 = vector.broadcast %34 : vector<16x1xf32> to vector<16x16xf32>
    %36 = arith.subf %32, %35 : vector<16x16xf32>
    %37 = math.exp %36 : vector<16x16xf32>
    %cst_16 = arith.constant dense<0.000000e+00> : vector<16xf32>
    %38 = vector.multi_reduction <add>, %37, %cst_16 [1] : vector<16x16xf32> to vector<16xf32>
    %39 = vector.shape_cast %38 : vector<16xf32> to vector<16x1xf32>
    %40 = tpu.reciprocal %39 {approx = true} : vector<16x1xf32> -> vector<16x1xf32>
    %41 = vector.broadcast %40 : vector<16x1xf32> to vector<16x16xf32>
    %42 = arith.mulf %37, %41 : vector<16x16xf32>
    %cst_17 = arith.constant dense<0.000000e+00> : vector<16x128xf32>
    %43 = tpu.matmul %42, %25, %cst_17 {dimension_numbers = #tpu.dot_dimension_numbers<[1], [0], [0], [1], [0, 0, 1, 1], [], []>} : vector<16x16xf32>, vector<16x128xf32>, vector<16x128xf32> -> vector<16x128xf32>
    %c1 = arith.constant 1 : index
    %c0_18 = arith.constant 0 : index
    %44 = vector.load %arg1[%c1, %c0_18] : memref<24x128xf32, #tpu.memory_space<vmem>>, vector<1x128xf32>
    %45 = vector.broadcast %44 : vector<1x128xf32> to vector<16x128xf32>
    %46 = arith.addf %43, %45 : vector<16x128xf32>
    %47 = arith.addf %46, %0 : vector<16x128xf32>
    %cst_19 = arith.constant dense<0.000000e+00> : vector<16xf32>
    %48 = vector.multi_reduction <add>, %47, %cst_19 [1] : vector<16x128xf32> to vector<16xf32>
    %49 = vector.shape_cast %48 : vector<16xf32> to vector<16x1xf32>
    %cst_20 = arith.constant 1.280000e+02 : f32
    %50 = vector.broadcast %cst_20 : f32 to vector<16x1xf32>
    %51 = arith.divf %49, %50 : vector<16x1xf32>
    %52 = arith.mulf %47, %47 : vector<16x128xf32>
    %cst_21 = arith.constant dense<0.000000e+00> : vector<16xf32>
    %53 = vector.multi_reduction <add>, %52, %cst_21 [1] : vector<16x128xf32> to vector<16xf32>
    %54 = vector.shape_cast %53 : vector<16xf32> to vector<16x1xf32>
    %cst_22 = arith.constant 1.280000e+02 : f32
    %55 = vector.broadcast %cst_22 : f32 to vector<16x1xf32>
    %56 = arith.divf %54, %55 : vector<16x1xf32>
    %57 = arith.mulf %51, %51 : vector<16x1xf32>
    %58 = arith.subf %56, %57 : vector<16x1xf32>
    %59 = vector.broadcast %51 : vector<16x1xf32> to vector<16x128xf32>
    %60 = arith.subf %47, %59 : vector<16x128xf32>
    %cst_23 = arith.constant 9.99999974E-6 : f32
    %61 = vector.broadcast %cst_23 : f32 to vector<16x1xf32>
    %62 = arith.addf %58, %61 : vector<16x1xf32>
    %63 = math.rsqrt %62 : vector<16x1xf32>
    %64 = vector.broadcast %63 : vector<16x1xf32> to vector<16x128xf32>
    %65 = arith.mulf %60, %64 : vector<16x128xf32>
    %c128 = arith.constant 128 : index
    %c0_24 = arith.constant 0 : index
    %66 = vector.load %arg2[%c128, %c0_24] : memref<512x128xf32, #tpu.memory_space<vmem>>, vector<128x128xf32>
    %cst_25 = arith.constant dense<0.000000e+00> : vector<16x128xf32>
    %67 = tpu.matmul %65, %66, %cst_25 {dimension_numbers = #tpu.dot_dimension_numbers<[1], [0], [0], [1], [0, 0, 1, 1], [], []>} : vector<16x128xf32>, vector<128x128xf32>, vector<16x128xf32> -> vector<16x128xf32>
    %c2 = arith.constant 2 : index
    %c0_26 = arith.constant 0 : index
    %68 = vector.load %arg1[%c2, %c0_26] : memref<24x128xf32, #tpu.memory_space<vmem>>, vector<1x128xf32>
    %69 = vector.broadcast %68 : vector<1x128xf32> to vector<16x128xf32>
    %70 = arith.addf %67, %69 : vector<16x128xf32>
    %cst_27 = arith.constant 5.000000e-01 : f32
    %71 = vector.broadcast %cst_27 : f32 to vector<16x128xf32>
    %72 = arith.mulf %71, %70 : vector<16x128xf32>
    %cst_28 = arith.constant 0.707106769 : f32
    %73 = vector.broadcast %cst_28 : f32 to vector<16x128xf32>
    %74 = arith.mulf %70, %73 : vector<16x128xf32>
    %75 = math.erf %74 : vector<16x128xf32>
    %cst_29 = arith.constant 1.000000e+00 : f32
    %76 = vector.broadcast %cst_29 : f32 to vector<16x128xf32>
    %77 = arith.addf %76, %75 : vector<16x128xf32>
    %78 = arith.mulf %72, %77 : vector<16x128xf32>
    %c384 = arith.constant 384 : index
    %c0_30 = arith.constant 0 : index
    %79 = vector.load %arg2[%c384, %c0_30] : memref<512x128xf32, #tpu.memory_space<vmem>>, vector<128x128xf32>
    %cst_31 = arith.constant dense<0.000000e+00> : vector<16x128xf32>
    %80 = tpu.matmul %78, %79, %cst_31 {dimension_numbers = #tpu.dot_dimension_numbers<[1], [0], [0], [1], [0, 0, 1, 1], [], []>} : vector<16x128xf32>, vector<128x128xf32>, vector<16x128xf32> -> vector<16x128xf32>
    %c3 = arith.constant 3 : index
    %c0_32 = arith.constant 0 : index
    %81 = vector.load %arg1[%c3, %c0_32] : memref<24x128xf32, #tpu.memory_space<vmem>>, vector<1x128xf32>
    %82 = vector.broadcast %81 : vector<1x128xf32> to vector<16x128xf32>
    %83 = arith.addf %80, %82 : vector<16x128xf32>
    %84 = arith.addf %47, %83 : vector<16x128xf32>
    %c0_33 = arith.constant 0 : index
    %c0_34 = arith.constant 0 : index
    %85 = vector.load %arg3[%c0_33, %c0_34] : memref<16x128xf32, #tpu.memory_space<vmem>>, vector<16x128xf32>
    tpu.vector_store %arg3[%c0_33, %c0_34], %84 {strides = array<i32>} : memref<16x128xf32, #tpu.memory_space<vmem>>, vector<16x128xf32>,
    return
  }
}

</mosaic_0001>

<llo_original>
// kernel: tpu_custom_call.1
$region0: #{tpu_custom_call.1}
  #allocation0 [shape = 'u32[]', space=smem, size = 0x4, offset = 0x4, fixed_abs, tag = 'smem constant byte address 0x4 - core index']
  #allocation1 [shape = 'u32[72,128]{1,0:T(1,128)}', space=vmem, size = 0x9000, scoped, tag = 'internal scratch']
  %s0 = inlined_call_operand.hbm [shape: f32[16,128], index: 0, kind: input, shape index: {}]
  %s1 = inlined_call_operand.hbm [shape: f32[24,128], index: 1, kind: input, shape index: {}]
  %s2 = inlined_call_operand.hbm [shape: f32[512,128], index: 2, kind: input, shape index: {}]
  %s3 = inlined_call_operand.hbm [shape: f32[16,128], index: 3, kind: output, shape index: {}]
  %s4 = sld [smem:[#allocation0]]
  $region34: #{tpu_custom_call.1} parent=0
    _
  %s6 = ssub.s32 1, %s4
  %s7 = scalar_select 0, %s6, %s4
  $region1: #{tpu_custom_call.1} parent=0
    #allocation2 [shape = 'u8[8192]{0}', space=vmem, size = 0x2000, scoped, tag = 'input window, operand 0, single buffered']
    #allocation3 [shape = 's32[1]{0}', space=sflag, size = 0x4, scoped, tag = 'scoped memory for tpu_custom_call.1']
    #allocation4 [shape = 's32[1]{0}', space=sflag, size = 0x4, scoped, tag = 'scoped memory for tpu_custom_call.1']
    #allocation5 [shape = 'u8[12288]{0}', space=vmem, size = 0x3000, scoped, tag = 'input window, operand 1, single buffered']
    #allocation6 [shape = 's32[1]{0}', space=sflag, size = 0x4, scoped, tag = 'scoped memory for tpu_custom_call.1']
    #allocation7 [shape = 'u8[262144]{0}', space=vmem, size = 0x40000, scoped, tag = 'input window, operand 2, single buffered']
    #allocation8 [shape = 'u8[8192]{0}', space=vmem, size = 0x2000, scoped, tag = 'output window, operand 0, single buffered']
    %8 = vsyncpa [#allocation3], 0
    %9 = vsyncpa [#allocation6], 0
    %10 = vsyncpa [#allocation4], 0
    // Predicated region
    $region2: #{tpu_custom_call.1} parent=1 // pred_check
      _
    $region3: #{tpu_custom_call.1} parent=1 // pred_check_branch
      %12 = sbr.rel (0) target = $region5
    $region4: #{tpu_custom_call.1} parent=1 // pred_region
      %14 = vsyncadd [#allocation3], 0
      %s15 = sshll.u32 %s0, 4
      %s16 = int_to_ptr.hbm [resolvable:$true] %s15
      %s17 = sshll.u32 [#allocation2], 4
      %s18 = int_to_ptr.vmem [resolvable:$true] %s17
      %23 = dma.hbm_to_vmem [thread:$0]  %s16, 256, %s18, [#allocation3], 128, 128, 8
    $region5: #{tpu_custom_call.1} parent=1 // pred_fallthru
      _
    // Predicated region
    $region6: #{tpu_custom_call.1} parent=1 // pred_check
      _
    $region7: #{tpu_custom_call.1} parent=1 // pred_check_branch
      %25 = sbr.rel (0) target = $region9
    $region8: #{tpu_custom_call.1} parent=1 // pred_region
      %27 = vsyncadd [#allocation6], 0
      %s28 = sshll.u32 %s1, 4
      %s29 = int_to_ptr.hbm [resolvable:$true] %s28
      %s30 = sshll.u32 [#allocation5], 4
      %s31 = int_to_ptr.vmem [resolvable:$true] %s30
      %36 = dma.hbm_to_vmem [thread:$0]  %s29, 384, %s31, [#allocation6], 128, 128, 8
    $region9: #{tpu_custom_call.1} parent=1 // pred_fallthru
      _
    // Predicated region
    $region10: #{tpu_custom_call.1} parent=1 // pred_check
      _
    $region11: #{tpu_custom_call.1} parent=1 // pred_check_branch
      %38 = sbr.rel (0) target = $region13
    $region12: #{tpu_custom_call.1} parent=1 // pred_region
      %40 = vsyncadd [#allocation6], 0
      %s41 = sshll.u32 %s2, 4
      %s42 = int_to_ptr.hbm [resolvable:$true] %s41
      %s43 = sshll.u32 [#allocation7], 4
      %s44 = int_to_ptr.vmem [resolvable:$true] %s43
      %49 = dma.hbm_to_vmem [thread:$0]  %s42, 8192, %s44, [#allocation6], 128, 128, 8
    $region13: #{tpu_custom_call.1} parent=1 // pred_fallthru
      _
    // Predicated region
    $region14: #{tpu_custom_call.1} parent=1 // pred_check
      _
    $region15: #{tpu_custom_call.1} parent=1 // pred_check_branch
      %51 = sbr.rel (0) target = $region17
    $region16: #{tpu_custom_call.1} parent=1 // pred_region
      %53 = dma.done [#allocation3], 256
    $region17: #{tpu_custom_call.1} parent=1 // pred_fallthru
      _
    // Predicated region
    $region18: #{tpu_custom_call.1} parent=1 // pred_check
      _
    $region19: #{tpu_custom_call.1} parent=1 // pred_check_branch
      %55 = sbr.rel (0) target = $region21
    $region20: #{tpu_custom_call.1} parent=1 // pred_region
      %57 = dma.done [#allocation6], 384
    $region21: #{tpu_custom_call.1} parent=1 // pred_fallthru
      _
    // Predicated region
    $region22: #{tpu_custom_call.1} parent=1 // pred_check
      _
    $region23: #{tpu_custom_call.1} parent=1 // pred_check_branch
      %59 = sbr.rel (0) target = $region25
    $region24: #{tpu_custom_call.1} parent=1 // pred_region
      %61 = dma.done [#allocation6], 8192
    $region25: #{tpu_custom_call.1} parent=1 // pred_fallthru
      _
    %v62 = vld [vmem:[#allocation2] sm:$0xff]
    %v63 = vld [vmem:[#allocation2 + $0x8] sm:$0xff]
    %64 = vadd.xlane.f32.xlu0 %v62
    %v65 = vpop.xlane.xlu0 %64
    %66 = vadd.xlane.f32.xlu0 %v63
    %v67 = vpop.xlane.xlu0 %66
    %v68 = vrcp.pop 128.0
    %v69 = vmul.f32 128.0, %v68
    %v70 = vsub.f32 1.0, %v69
    %v71 = vmul.f32 %v68, %v70
    %v72 = vadd.f32 %v68, %v71
    %vm73 = vweird.f32 %v68
    %v74 = vsel %vm73, %v68, %v72
    %v75 = vmul.f32 %v65, %v74
    %v76 = vmul.f32 %v67, %v74
    %v77 = vmul.f32 %v62, %v62
    %v78 = vmul.f32 %v63, %v63
    %79 = vadd.xlane.f32.xlu0 %v77
    %v80 = vpop.xlane.xlu0 %79
    %81 = vadd.xlane.f32.xlu0 %v78
    %v82 = vpop.xlane.xlu0 %81
    %v83 = vmul.f32 %v80, %v74
    %v84 = vmul.f32 %v82, %v74
    %v85 = vmul.f32 %v75, %v75
    %v86 = vmul.f32 %v76, %v76
    %v87 = vsub.f32 %v83, %v85
    %v88 = vsub.f32 %v84, %v86
    %v89 = vsub.f32 %v62, %v75
    %v90 = vsub.f32 %v63, %v76
    %v91 = vadd.f32 %v87, 1e-05
    %v92 = vadd.f32 %v88, 1e-05
    %v93 = vrsqrt.pop %v91
    %v94 = vmul.f32 %v93, %v91
    %v95 = vmul.f32 %v94, %v93
    %v96 = vmul.f32 0.5, %v95
    %v97 = vsub.f32 1.5, %v96
    %v98 = vmul.f32 %v93, %v97
    %vm99 = vweird.f32 %v91
    %vm100 = vweird.f32 %v93
    %vm101 = vmor %vm99, %vm100
    %v102 = vsel %vm101, %v93, %v98
    %v103 = vrsqrt.pop %v92
    %v104 = vmul.f32 %v103, %v92
    %v105 = vmul.f32 %v104, %v103
    %v106 = vmul.f32 0.5, %v105
    %v107 = vsub.f32 1.5, %v106
    %v108 = vmul.f32 %v103, %v107
    %vm109 = vweird.f32 %v92
    %vm110 = vweird.f32 %v103
    %vm111 = vmor %vm109, %vm110
    %v112 = vsel %vm111, %v103, %v108
    %v113 = vmul.f32 %v89, %v102
    %v114 = vmul.f32 %v90, %v112
    %v115 = vld [vmem:[#allocation7] sm:$0xff]
    %v116 = vld [vmem:[#allocation7 + $0x8] sm:$0xff]
    %v117 = vld [vmem:[#allocation7 + $0x10] sm:$0xff]
    %v118 = vld [vmem:[#allocation7 + $0x18] sm:$0xff]
    %v119 = vld [vmem:[#allocation7 + $0x20] sm:$0xff]
    %v120 = vld [vmem:[#allocation7 + $0x28] sm:$0xff]
    %v121 = vld [vmem:[#allocation7 + $0x30] sm:$0xff]
    %v122 = vld [vmem:[#allocation7 + $0x38] sm:$0xff]
    %v123 = vld [vmem:[#allocation7 + $0x40] sm:$0xff]
    %v124 = vld [vmem:[#allocation7 + $0x48] sm:$0xff]
    %v125 = vld [vmem:[#allocation7 + $0x50] sm:$0xff]
    %v126 = vld [vmem:[#allocation7 + $0x58] sm:$0xff]
    %v127 = vld [vmem:[#allocation7 + $0x60] sm:$0xff]
    %v128 = vld [vmem:[#allocation7 + $0x68] sm:$0xff]
    %v129 = vld [vmem:[#allocation7 + $0x70] sm:$0xff]
    %v130 = vld [vmem:[#allocation7 + $0x78] sm:$0xff]
    %v131 = vld [vmem:[#allocation5] sm:$0x1]
    %v132 = vperm.slane %v131, 0
    %133 = vmatpush.msra.mxu0 %v130
    %134 = vmatpush.msra.mxu0 %v129
    %135 = vmatpush.msra.mxu0 %v128
    %136 = vmatpush.msra.mxu0 %v127
    %137 = vmatpush.msra.mxu0 %v126
    %138 = vmatpush.msra.mxu0 %v125
    %139 = vmatpush.msra.mxu0 %v124
    %140 = vmatpush.msra.mxu0 %v123
    %141 = vmatpush.msra.mxu0 %v122
    %142 = vmatpush.msra.mxu0 %v121
    %143 = vmatpush.msra.mxu0 %v120
    %144 = vmatpush.msra.mxu0 %v119
    %145 = vmatpush.msra.mxu0 %v118
    %146 = vmatpush.msra.mxu0 %v117
    %147 = vmatpush.msra.mxu0 %v116
    %148 = vmatpush.msra.mxu0 %v115
    %149 = vmatmul.f32.gmra.mxu0 %v113
    %v150 = vpop.f32.mrf.mxu0
    %v151 = vadd.f32 %v132, %v150
    %152 = vmatmul.f32.gmra.mxu0 %v114
    %v153 = vpop.f32.mrf.mxu0
    %v154 = vadd.f32 %v132, %v153
    %155 = vdwg.mxu0
    %v156 = vld [vmem:[#allocation7 + $0x100] sm:$0xff]
    %v157 = vld [vmem:[#allocation7 + $0x108] sm:$0xff]
    %v158 = vld [vmem:[#allocation7 + $0x110] sm:$0xff]
    %v159 = vld [vmem:[#allocation7 + $0x118] sm:$0xff]
    %v160 = vld [vmem:[#allocation7 + $0x120] sm:$0xff]
    %v161 = vld [vmem:[#allocation7 + $0x128] sm:$0xff]
    %v162 = vld [vmem:[#allocation7 + $0x130] sm:$0xff]
    %v163 = vld [vmem:[#allocation7 + $0x138] sm:$0xff]
    %v164 = vld [vmem:[#allocation7 + $0x140] sm:$0xff]
    %v165 = vld [vmem:[#allocation7 + $0x148] sm:$0xff]
    %v166 = vld [vmem:[#allocation7 + $0x150] sm:$0xff]
    %v167 = vld [vmem:[#allocation7 + $0x158] sm:$0xff]
    %v168 = vld [vmem:[#allocation7 + $0x160] sm:$0xff]
    %v169 = vld [vmem:[#allocation7 + $0x168] sm:$0xff]
    %v170 = vld [vmem:[#allocation7 + $0x170] sm:$0xff]
    %v171 = vld [vmem:[#allocation7 + $0x178] sm:$0xff]
    %172 = vmatpush.msra.mxu0 %v171
    %173 = vmatpush.msra.mxu0 %v170
    %174 = vmatpush.msra.mxu0 %v169
    %175 = vmatpush.msra.mxu0 %v168
    %176 = vmatpush.msra.mxu0 %v167
    %177 = vmatpush.msra.mxu0 %v166
    %178 = vmatpush.msra.mxu0 %v165
    %179 = vmatpush.msra.mxu0 %v164
    %180 = vmatpush.msra.mxu0 %v163
    %181 = vmatpush.msra.mxu0 %v162
    %182 = vmatpush.msra.mxu0 %v161
    %183 = vmatpush.msra.mxu0 %v160
    %184 = vmatpush.msra.mxu0 %v159
    %185 = vmatpush.msra.mxu0 %v158
    %186 = vmatpush.msra.mxu0 %v157
    %187 = vmatpush.msra.mxu0 %v156
    %188 = vmatmul.f32.gmra.mxu0 %v151
    %v189 = vpop.f32.mrf.mxu0
    %v190 = vadd.f32 0.0, %v189
    %191 = vmatmul.f32.gmra.mxu0 %v154
    %v192 = vpop.f32.mrf.mxu0
    %v193 = vadd.f32 0.0, %v192
    %194 = vdwg.mxu0
    %197 = vrot.lane.b32.xlu0 %v151, 120
    %v198 = vpop.permute.xlu0 %197
    %199 = vrot.lane.b32.xlu0 %v154, 120
    %v200 = vpop.permute.xlu0 %199
    %vm201 = vcmask 64512
    %v202 = vsel %vm201, %v151, 0
    %v204 = vsel %vm201, %v154, 0
    %v206 = vsel %vm201, %v198, 0
    %v208 = vsel %vm201, %v200, 0
    %210 = vmatpush.xpose.msra.mxu0 0.0
    %211 = vmatpush.xpose.msra.mxu0 0.0
    %212 = vmatpush.xpose.msra.mxu0 0.0
    %213 = vmatpush.xpose.msra.mxu0 0.0
    %214 = vmatpush.xpose.msra.mxu0 0.0
    %215 = vmatpush.xpose.msra.mxu0 0.0
    %216 = vmatpush.xpose.msra.mxu0 0.0
    %217 = vmatpush.xpose.msra.mxu0 0.0
    %218 = vmatpush.xpose.msra.mxu0 0.0
    %219 = vmatpush.xpose.msra.mxu0 0.0
    %220 = vmatpush.xpose.msra.mxu0 0.0
    %221 = vmatpush.xpose.msra.mxu0 0.0
    %222 = vmatpush.xpose.msra.mxu0 0.0
    %223 = vmatpush.xpose.msra.mxu0 0.0
    %224 = vmatpush.xpose.msra.mxu0 %v208
    %225 = vmatpush.xpose.msra.mxu0 %v206
    %226 = vmatmul.f32.gmra.mxu0 %v202
    %v227 = vpop.f32.mrf.mxu0
    %v228 = vadd.f32 0.0, %v227
    %229 = vmatmul.f32.gmra.mxu0 %v204
    %v230 = vpop.f32.mrf.mxu0
    %v231 = vadd.f32 0.0, %v230
    %232 = vdwg.mxu0
    %v233 = vmul.f32 %v228, 0.35355338
    %v234 = vmul.f32 %v231, 0.35355338
    %v235 = vld [vmem:[#allocation5 + $0x8] sm:$0xff]
    %v236 = vld [vmem:[#allocation5 + $0x10] sm:$0xff]
    %v237 = vadd.f32 %v233, %v235
    %v238 = vadd.f32 %v234, %v236
    %vm239 = vcmask 130048
    %v240 = vsel %vm239, %v237, -inf
    %241 = vmax.xlane.f32.xlu0 %v240
    %v242 = vpop.xlane.xlu0 %241
    %v243 = vsel %vm239, %v238, -inf
    %244 = vmax.xlane.f32.xlu0 %v243
    %v245 = vpop.xlane.xlu0 %244
    %v246 = vsub.f32 %v237, %v242
    %v247 = vsub.f32 %v238, %v245
    %v248 = vmul.f32 %v246, 1.442695
    %v249 = vpow.pop %v248
    %v250 = vmul.f32 %v247, 1.442695
    %v251 = vpow.pop %v250
    %v252 = vsel %vm239, %v249, 0.0
    %253 = vadd.xlane.f32.xlu0 %v252
    %v254 = vpop.xlane.xlu0 %253
    %v255 = vsel %vm239, %v251, 0.0
    %256 = vadd.xlane.f32.xlu0 %v255
    %v257 = vpop.xlane.xlu0 %256
    %v258 = vrcp.pop %v254
    %v259 = vrcp.pop %v257
    %v260 = vmul.f32 %v249, %v258
    %v261 = vmul.f32 %v251, %v259
    %v262 = vld [vmem:[#allocation5 + $0x1] sm:$0x1]
    %v263 = vperm.slane %v262, 0
    %v265 = vsel %vm239, %v260, 0
    %v268 = vsel %vm239, %v261, 0
    %270 = vmatpush.msra.mxu0 0.0
    %271 = vmatpush.msra.mxu0 0.0
    %272 = vmatpush.msra.mxu0 0.0
    %273 = vmatpush.msra.mxu0 0.0
    %274 = vmatpush.msra.mxu0 0.0
    %275 = vmatpush.msra.mxu0 0.0
    %276 = vmatpush.msra.mxu0 0.0
    %277 = vmatpush.msra.mxu0 0.0
    %278 = vmatpush.msra.mxu0 0.0
    %279 = vmatpush.msra.mxu0 0.0
    %280 = vmatpush.msra.mxu0 0.0
    %281 = vmatpush.msra.mxu0 0.0
    %282 = vmatpush.msra.mxu0 0.0
    %283 = vmatpush.msra.mxu0 0.0
    %284 = vmatpush.msra.mxu0 %v193
    %285 = vmatpush.msra.mxu0 %v190
    %286 = vmatmul.f32.gmra.mxu0 %v265
    %v287 = vpop.f32.mrf.mxu0
    %v288 = vadd.f32 %v263, %v287
    %289 = vmatmul.f32.gmra.mxu0 %v268
    %v290 = vpop.f32.mrf.mxu0
    %v291 = vadd.f32 %v263, %v290
    %292 = vdwg.mxu0
    %v293 = vadd.f32 %v288, %v62
    %v294 = vadd.f32 %v291, %v63
    %295 = vadd.xlane.f32.xlu0 %v293
    %v296 = vpop.xlane.xlu0 %295
    %297 = vadd.xlane.f32.xlu0 %v294
    %v298 = vpop.xlane.xlu0 %297
    %v299 = vmul.f32 %v296, %v74
    %v300 = vmul.f32 %v298, %v74
    %v301 = vmul.f32 %v293, %v293
    %v302 = vmul.f32 %v294, %v294
    %303 = vadd.xlane.f32.xlu0 %v301
    %v304 = vpop.xlane.xlu0 %303
    %305 = vadd.xlane.f32.xlu0 %v302
    %v306 = vpop.xlane.xlu0 %305
    %v307 = vmul.f32 %v304, %v74
    %v308 = vmul.f32 %v306, %v74
    %v309 = vmul.f32 %v299, %v299
    %v310 = vmul.f32 %v300, %v300
    %v311 = vsub.f32 %v307, %v309
    %v312 = vsub.f32 %v308, %v310
    %v313 = vsub.f32 %v293, %v299
    %v314 = vsub.f32 %v294, %v300
    %v315 = vadd.f32 %v311, 1e-05
    %v316 = vadd.f32 %v312, 1e-05
    %v317 = vrsqrt.pop %v315
    %v318 = vmul.f32 %v317, %v315
    %v319 = vmul.f32 %v318, %v317
    %v320 = vmul.f32 0.5, %v319
    %v321 = vsub.f32 1.5, %v320
    %v322 = vmul.f32 %v317, %v321
    %vm323 = vweird.f32 %v315
    %vm324 = vweird.f32 %v317
    %vm325 = vmor %vm323, %vm324
    %v326 = vsel %vm325, %v317, %v322
    %v327 = vrsqrt.pop %v316
    %v328 = vmul.f32 %v327, %v316
    %v329 = vmul.f32 %v328, %v327
    %v330 = vmul.f32 0.5, %v329
    %v331 = vsub.f32 1.5, %v330
    %v332 = vmul.f32 %v327, %v331
    %vm333 = vweird.f32 %v316
    %vm334 = vweird.f32 %v327
    %vm335 = vmor %vm333, %vm334
    %v336 = vsel %vm335, %v327, %v332
    %v337 = vmul.f32 %v313, %v326
    %v338 = vmul.f32 %v314, %v336
    %v339 = vld [vmem:[#allocation7 + $0x80] sm:$0xff]
    %v340 = vld [vmem:[#allocation7 + $0x88] sm:$0xff]
    %v341 = vld [vmem:[#allocation7 + $0x90] sm:$0xff]
    %v342 = vld [vmem:[#allocation7 + $0x98] sm:$0xff]
    %v343 = vld [vmem:[#allocation7 + $0xa0] sm:$0xff]
    %v344 = vld [vmem:[#allocation7 + $0xa8] sm:$0xff]
    %v345 = vld [vmem:[#allocation7 + $0xb0] sm:$0xff]
    %v346 = vld [vmem:[#allocation7 + $0xb8] sm:$0xff]
    %v347 = vld [vmem:[#allocation7 + $0xc0] sm:$0xff]
    %v348 = vld [vmem:[#allocation7 + $0xc8] sm:$0xff]
    %v349 = vld [vmem:[#allocation7 + $0xd0] sm:$0xff]
    %v350 = vld [vmem:[#allocation7 + $0xd8] sm:$0xff]
    %v351 = vld [vmem:[#allocation7 + $0xe0] sm:$0xff]
    %v352 = vld [vmem:[#allocation7 + $0xe8] sm:$0xff]
    %v353 = vld [vmem:[#allocation7 + $0xf0] sm:$0xff]
    %v354 = vld [vmem:[#allocation7 + $0xf8] sm:$0xff]
    %v355 = vld [vmem:[#allocation5 + $0x2] sm:$0x1]
    %v356 = vperm.slane %v355, 0
    %357 = vmatpush.msra.mxu0 %v354
    %358 = vmatpush.msra.mxu0 %v353
    %359 = vmatpush.msra.mxu0 %v352
    %360 = vmatpush.msra.mxu0 %v351
    %361 = vmatpush.msra.mxu0 %v350
    %362 = vmatpush.msra.mxu0 %v349
    %363 = vmatpush.msra.mxu0 %v348
    %364 = vmatpush.msra.mxu0 %v347
    %365 = vmatpush.msra.mxu0 %v346
    %366 = vmatpush.msra.mxu0 %v345
    %367 = vmatpush.msra.mxu0 %v344
    %368 = vmatpush.msra.mxu0 %v343
    %369 = vmatpush.msra.mxu0 %v342
    %370 = vmatpush.msra.mxu0 %v341
    %371 = vmatpush.msra.mxu0 %v340
    %372 = vmatpush.msra.mxu0 %v339
    %373 = vmatmul.f32.gmra.mxu0 %v337
    %v374 = vpop.f32.mrf.mxu0
    %v375 = vadd.f32 %v356, %v374
    %376 = vmatmul.f32.gmra.mxu0 %v338
    %v377 = vpop.f32.mrf.mxu0
    %v378 = vadd.f32 %v356, %v377
    %379 = vdwg.mxu0
    %v380 = vmul.f32 %v375, 0.5
    %v381 = vmul.f32 %v378, 0.5
    %v382 = vmul.f32 %v375, 0.70710677
    %v383 = vmul.f32 %v378, 0.70710677
    %v384 = vmul.f32 %v382, %v382
    %v385 = vmin.f32 16.0, %v384
    %v386 = vmul.f32 %v385, 2.1237322e-06
    %v387 = vadd.f32 %v386, 0.00028619796
    %v388 = vmul.f32 %v385, %v387
    %v389 = vadd.f32 %v388, 0.0036580483
    %v390 = vmul.f32 %v385, %v389
    %v391 = vadd.f32 %v390, 0.05243302
    %v392 = vmul.f32 %v385, %v391
    %v393 = vadd.f32 %v392, 0.18741608
    %v394 = vmul.f32 %v385, %v393
    %v395 = vadd.f32 %v394, 1.1283791
    %v396 = vmul.f32 %v382, %v395
    %v397 = vmul.f32 %v385, 3.8918573e-05
    %v398 = vadd.f32 %v397, 0.001143296
    %v399 = vmul.f32 %v385, %v398
    %v400 = vadd.f32 %v399, 0.014752088
    %v401 = vmul.f32 %v385, %v400
    %v402 = vadd.f32 %v401, 0.112945676
    %v403 = vmul.f32 %v385, %v402
    %v404 = vadd.f32 %v403, 0.4994258
    %v405 = vmul.f32 %v385, %v404
    %v406 = vadd.f32 %v405, 1.0
    %v407 = vrcp.pop %v406
    %v408 = vmul.f32 %v406, %v407
    %v409 = vsub.f32 1.0, %v408
    %v410 = vmul.f32 %v407, %v409
    %v411 = vadd.f32 %v407, %v410
    %vm412 = vweird.f32 %v406
    %vm413 = vweird.f32 %v407
    %vm414 = vmor %vm412, %vm413
    %v415 = vsel %vm414, %v407, %v411
    %v416 = vand.u32 2147483647, %v406
    %vm417 = vcmp.eq.f32.partialorder %v416, 8.507059e+37
    %v418 = vand.u32 %v406, 2147483648
    %v419 = vor.u32 1.1754944e-38, %v418
    %v420 = vsel %vm417, %v419, %v415
    %v421 = vmul.f32 %v396, %v420
    %v422 = vmin.f32 %v421, 1.0
    %v423 = vmax.f32 %v422, -1.0
    %v424 = vmul.f32 %v383, %v383
    %v425 = vmin.f32 16.0, %v424
    %v426 = vmul.f32 %v425, 2.1237322e-06
    %v427 = vadd.f32 %v426, 0.00028619796
    %v428 = vmul.f32 %v425, %v427
    %v429 = vadd.f32 %v428, 0.0036580483
    %v430 = vmul.f32 %v425, %v429
    %v431 = vadd.f32 %v430, 0.05243302
    %v432 = vmul.f32 %v425, %v431
    %v433 = vadd.f32 %v432, 0.18741608
    %v434 = vmul.f32 %v425, %v433
    %v435 = vadd.f32 %v434, 1.1283791
    %v436 = vmul.f32 %v383, %v435
    %v437 = vmul.f32 %v425, 3.8918573e-05
    %v438 = vadd.f32 %v437, 0.001143296
    %v439 = vmul.f32 %v425, %v438
    %v440 = vadd.f32 %v439, 0.014752088
    %v441 = vmul.f32 %v425, %v440
    %v442 = vadd.f32 %v441, 0.112945676
    %v443 = vmul.f32 %v425, %v442
    %v444 = vadd.f32 %v443, 0.4994258
    %v445 = vmul.f32 %v425, %v444
    %v446 = vadd.f32 %v445, 1.0
    %v447 = vrcp.pop %v446
    %v448 = vmul.f32 %v446, %v447
    %v449 = vsub.f32 1.0, %v448
    %v450 = vmul.f32 %v447, %v449
    %v451 = vadd.f32 %v447, %v450
    %vm452 = vweird.f32 %v446
    %vm453 = vweird.f32 %v447
    %vm454 = vmor %vm452, %vm453
    %v455 = vsel %vm454, %v447, %v451
    %v456 = vand.u32 2147483647, %v446
    %vm457 = vcmp.eq.f32.partialorder %v456, 8.507059e+37
    %v458 = vand.u32 %v446, 2147483648
    %v459 = vor.u32 1.1754944e-38, %v458
    %v460 = vsel %vm457, %v459, %v455
    %v461 = vmul.f32 %v436, %v460
    %v462 = vmin.f32 %v461, 1.0
    %v463 = vmax.f32 %v462, -1.0
    %v464 = vadd.f32 %v423, 1.0
    %v465 = vadd.f32 %v463, 1.0
    %v466 = vmul.f32 %v380, %v464
    %v467 = vmul.f32 %v381, %v465
    %v468 = vld [vmem:[#allocation7 + $0x180] sm:$0xff]
    %v469 = vld [vmem:[#allocation7 + $0x188] sm:$0xff]
    %v470 = vld [vmem:[#allocation7 + $0x190] sm:$0xff]
    %v471 = vld [vmem:[#allocation7 + $0x198] sm:$0xff]
    %v472 = vld [vmem:[#allocation7 + $0x1a0] sm:$0xff]
    %v473 = vld [vmem:[#allocation7 + $0x1a8] sm:$0xff]
    %v474 = vld [vmem:[#allocation7 + $0x1b0] sm:$0xff]
    %v475 = vld [vmem:[#allocation7 + $0x1b8] sm:$0xff]
    %v476 = vld [vmem:[#allocation7 + $0x1c0] sm:$0xff]
    %v477 = vld [vmem:[#allocation7 + $0x1c8] sm:$0xff]
    %v478 = vld [vmem:[#allocation7 + $0x1d0] sm:$0xff]
    %v479 = vld [vmem:[#allocation7 + $0x1d8] sm:$0xff]
    %v480 = vld [vmem:[#allocation7 + $0x1e0] sm:$0xff]
    %v481 = vld [vmem:[#allocation7 + $0x1e8] sm:$0xff]
    %v482 = vld [vmem:[#allocation7 + $0x1f0] sm:$0xff]
    %v483 = vld [vmem:[#allocation7 + $0x1f8] sm:$0xff]
    %v484 = vld [vmem:[#allocation5 + $0x3] sm:$0x1]
    %v485 = vperm.slane %v484, 0
    %486 = vmatpush.msra.mxu0 %v483
    %487 = vmatpush.msra.mxu0 %v482
    %488 = vmatpush.msra.mxu0 %v481
    %489 = vmatpush.msra.mxu0 %v480
    %490 = vmatpush.msra.mxu0 %v479
    %491 = vmatpush.msra.mxu0 %v478
    %492 = vmatpush.msra.mxu0 %v477
    %493 = vmatpush.msra.mxu0 %v476
    %494 = vmatpush.msra.mxu0 %v475
    %495 = vmatpush.msra.mxu0 %v474
    %496 = vmatpush.msra.mxu0 %v473
    %497 = vmatpush.msra.mxu0 %v472
    %498 = vmatpush.msra.mxu0 %v471
    %499 = vmatpush.msra.mxu0 %v470
    %500 = vmatpush.msra.mxu0 %v469
    %501 = vmatpush.msra.mxu0 %v468
    %502 = vmatmul.f32.gmra.mxu0 %v466
    %v503 = vpop.f32.mrf.mxu0
    %v504 = vadd.f32 %v485, %v503
    %505 = vmatmul.f32.gmra.mxu0 %v467
    %v506 = vpop.f32.mrf.mxu0
    %v507 = vadd.f32 %v485, %v506
    %508 = vdwg.mxu0
    %v509 = vadd.f32 %v293, %v504
    %v510 = vadd.f32 %v294, %v507
    %511 = vst [vmem:[#allocation8] sm:$0xff] %v509
    %512 = vst [vmem:[#allocation8 + $0x8] sm:$0xff] %v510
    // Predicated region
    $region26: #{tpu_custom_call.1} parent=1 // pred_check
      _
    $region27: #{tpu_custom_call.1} parent=1 // pred_check_branch
      %514 = sbr.rel (0) target = $region29
    $region28: #{tpu_custom_call.1} parent=1 // pred_region
      %516 = vsyncadd [#allocation4], 0
      %s517 = sshll.u32 [#allocation8], 4
      %s518 = int_to_ptr.vmem [resolvable:$true] %s517
      %s519 = sshll.u32 %s3, 4
      %s520 = int_to_ptr.hbm [resolvable:$true] %s519
      %525 = dma.vmem_to_hbm [thread:$0]  %s518, 256, %s520, [#allocation4], 128, 128, 8
    $region29: #{tpu_custom_call.1} parent=1 // pred_fallthru
      _
    // Predicated region
    $region30: #{tpu_custom_call.1} parent=1 // pred_check
      _
    $region31: #{tpu_custom_call.1} parent=1 // pred_check_branch
      %527 = sbr.rel (0) target = $region33
    $region32: #{tpu_custom_call.1} parent=1 // pred_region
      %529 = dma.done [#allocation4], 256
    $region33: #{tpu_custom_call.1} parent=1 // pred_fallthru
      _
    %530 = vsyncpa [#allocation3], 1
    %531 = vsyncpa [#allocation6], 1
    %532 = vsyncpa [#allocation4], 1

</llo_original>
